<compile_context>
chip_gen: v6e
topology: v6e:2x2x1
jax: 0.10.0
libtpu: 0.0.40
codegen_flags: <defaults>
</compile_context>

<pallas_src>
import jax
import jax.numpy as jnp
from jax.experimental import pallas as pl
from jax.experimental.pallas import tpu as pltpu

LANE = 128


def _round_up(n: int, m: int) -> int:
    return ((n + m - 1) // m) * m


def simplenet_kernel(x_ref, w1_ref, b1_ref, w2_ref, b2_ref, w3_ref, b3_ref,
                     out_ref):
    # layer1 (BN1 folded into w1/b1) + ReLU.  Dropout = identity (eval mode).
    h = jnp.dot(x_ref[...], w1_ref[...], preferred_element_type=jnp.float32)
    h = jnp.maximum(h + b1_ref[...], 0.0)

    # layer2 (BN2 folded into w2/b2) + ReLU.  Cast to the compute dtype only at the
    # matmul input; bias-add / ReLU stay f32.
    h = jnp.dot(h.astype(w2_ref.dtype), w2_ref[...],
                preferred_element_type=jnp.float32)
    h = jnp.maximum(h + b2_ref[...], 0.0)

    # layer3 (class dim is lane-padded to a multiple of 128; wrapper strips it).
    out = jnp.dot(h.astype(w3_ref.dtype), w3_ref[...],
                  preferred_element_type=jnp.float32)
    out_ref[...] = (out + b3_ref[...]).astype(out_ref.dtype)


def make_simplenet_forward(params, *, compute_dtype=jnp.float32,
                           out_dtype=jnp.float32, batch_tile=512, eps=1e-5):
    """Fold BN + pad/cast the weights ONCE; return a jitted forward(x) closure.

    The closure only pads/casts x, runs the pallas_call and strips padding, so
    per-call host work is minimal and the weights stay resident in VMEM.
    """
    in_f, h1_f = params["w1"].shape
    h2_f = params["w2"].shape[1]
    c_f = params["w3"].shape[1]

    # ---- fold BatchNorm (eval running stats + affine) into preceding Linear ----
    s1 = params["bn1_gamma"] / jnp.sqrt(params["bn1_var"] + eps)
    t1 = params["bn1_beta"] - params["bn1_mean"] * s1
    s2 = params["bn2_gamma"] / jnp.sqrt(params["bn2_var"] + eps)
    t2 = params["bn2_beta"] - params["bn2_mean"] * s2

    # ---- lane-friendly zero padding (128-lane last dims), done once ----
    in_p = _round_up(in_f, LANE)
    h1_p = _round_up(h1_f, LANE)
    h2_p = _round_up(h2_f, LANE)
    c_p = _round_up(c_f, LANE)

    def pad2(a, r, c):
        return jnp.pad(a, ((0, r - a.shape[0]), (0, c - a.shape[1])))

    def pad_row(v, c):
        return jnp.pad(v, (0, c - v.shape[0])).reshape(1, c)

    w1_p = pad2(params["w1"] * s1[None, :], in_p, h1_p).astype(compute_dtype)
    w2_p = pad2(params["w2"] * s2[None, :], h1_p, h2_p).astype(compute_dtype)
    w3_p = pad2(params["w3"], h2_p, c_p).astype(compute_dtype)
    b1_p = pad_row(params["b1"] * s1 + t1, h1_p)   # biases stay f32 (post-acc add)
    b2_p = pad_row(params["b2"] * s2 + t2, h2_p)
    b3_p = pad_row(params["b3"], c_p)

    # x is cast host-side when computing in bf16 (halves the dominant HBM stream).
    x_dtype = jnp.bfloat16 if compute_dtype == jnp.bfloat16 else jnp.float32
    sub = 16 if x_dtype == jnp.bfloat16 else 8     # sublane packing for x/out tiles

    w_isz = jnp.dtype(compute_dtype).itemsize
    x_isz = jnp.dtype(x_dtype).itemsize
    o_isz = jnp.dtype(out_dtype).itemsize

    @jax.jit
    def forward(x):
        B = x.shape[0]
        assert x.shape[1] == in_f

        # Balanced batch tiling: minimize padding; use >=2 grid steps when the
        # batch allows so the "parallel" axis shards across v7x's 2 TensorCores.
        n_tiles = max(pl.cdiv(B, batch_tile), min(2, pl.cdiv(B, sub)))
        tb = _round_up(pl.cdiv(B, n_tiles), sub)
        b_p = _round_up(B, tb)
        grid = (b_p // tb,)

        # Explicit VMEM budget: single-buffered weights, double-buffered x/out
        # tiles, f32 intermediates; clamped to a safe per-generation range.
        weight_bytes = ((in_p * h1_p + h1_p * h2_p + h2_p * c_p) * w_isz
                        + 8 * (h1_p + h2_p + c_p) * 4)      # (1,N) bias sublane pad
        io_bytes = 2 * tb * in_p * x_isz + 2 * tb * c_p * o_isz
        act_bytes = tb * (h1_p + h2_p + c_p) * 4
        footprint = weight_bytes + io_bytes + act_bytes
        vmem_limit = int(min(max(2 * footprint, 32 << 20), 120 << 20))

        x_p = jnp.pad(x, ((0, b_p - B), (0, in_p - in_f))).astype(x_dtype)

        const = lambda i: (0, 0)                    # resident: same block each step
        resident = dict(pipeline_mode=pl.Buffered(1))   # single-buffer residents

        flops = 2 * b_p * (in_p * h1_p + h1_p * h2_p + h2_p * c_p)
        bytes_accessed = (b_p * in_p * x_isz + weight_bytes + b_p * c_p * o_isz)

        out_p = pl.pallas_call(
            simplenet_kernel,
            out_shape=jax.ShapeDtypeStruct((b_p, c_p), out_dtype),
            grid=grid,
            in_specs=[
                pl.BlockSpec((tb, in_p), lambda i: (i, 0)),
                pl.BlockSpec((in_p, h1_p), const, **resident),
                pl.BlockSpec((1, h1_p), const, **resident),
                pl.BlockSpec((h1_p, h2_p), const, **resident),
                pl.BlockSpec((1, h2_p), const, **resident),
                pl.BlockSpec((h2_p, c_p), const, **resident),
                pl.BlockSpec((1, c_p), const, **resident),
            ],
            out_specs=pl.BlockSpec((tb, c_p), lambda i: (i, 0)),
            compiler_params=pltpu.CompilerParams(
                dimension_semantics=("parallel",),
                vmem_limit_bytes=vmem_limit),
            cost_estimate=pl.CostEstimate(
                flops=flops, transcendentals=0, bytes_accessed=bytes_accessed),
        )(x_p, w1_p, b1_p, w2_p, b2_p, w3_p, b3_p)

        # Strip batch padding and lane padding of the class dimension.
        return out_p[:B, :c_f]

    return forward


def init_params(key, input_size, hidden_size, num_classes):
    h2 = hidden_size // 2
    ks = jax.random.split(key, 12)
    # Linear weights stored as (in, out) == PyTorch weight.T
    return {
        "w1": jax.random.normal(ks[0], (input_size, hidden_size), jnp.float32) * 0.1,
        "b1": jax.random.normal(ks[1], (hidden_size,), jnp.float32) * 0.1,
        "w2": jax.random.normal(ks[2], (hidden_size, h2), jnp.float32) * 0.1,
        "b2": jax.random.normal(ks[3], (h2,), jnp.float32) * 0.1,
        "w3": jax.random.normal(ks[4], (h2, num_classes), jnp.float32) * 0.1,
        "b3": jax.random.normal(ks[5], (num_classes,), jnp.float32) * 0.1,
        # BatchNorm1d params + running stats (deterministic, non-trivial)
        "bn1_gamma": 1.0 + 0.1 * jax.random.normal(ks[6], (hidden_size,), jnp.float32),
        "bn1_beta": 0.1 * jax.random.normal(ks[7], (hidden_size,), jnp.float32),
        "bn1_mean": 0.1 * jax.random.normal(ks[8], (hidden_size,), jnp.float32),
        "bn1_var": jnp.abs(jax.random.normal(ks[9], (hidden_size,), jnp.float32)) + 0.5,
        "bn2_gamma": 1.0 + 0.1 * jax.random.normal(ks[10], (h2,), jnp.float32),
        "bn2_beta": 0.1 * jax.random.normal(ks[11], (h2,), jnp.float32),
        "bn2_mean": jnp.zeros((h2,), jnp.float32),
        "bn2_var": jnp.ones((h2,), jnp.float32),
    }


def reference_forward(x, params, eps=1e-5):
    """Pure-JAX reference matching eval-mode PyTorch forward."""
    h = x @ params["w1"] + params["b1"]
    h = (h - params["bn1_mean"]) / jnp.sqrt(params["bn1_var"] + eps)
    h = h * params["bn1_gamma"] + params["bn1_beta"]
    h = jnp.maximum(h, 0.0)
    h = h @ params["w2"] + params["b2"]
    h = (h - params["bn2_mean"]) / jnp.sqrt(params["bn2_var"] + eps)
    h = h * params["bn2_gamma"] + params["bn2_beta"]
    h = jnp.maximum(h, 0.0)
    return h @ params["w3"] + params["b3"]


if __name__ == "__main__":
    input_size, hidden_size, num_classes = 16, 32, 4

    key = jax.random.PRNGKey(0)
    k_x, k_x2, k_p = jax.random.split(key, 3)
    params = init_params(k_p, input_size, hidden_size, num_classes)

    # f32 path: exact comparison against the pure-JAX eval-mode reference.
    fwd_f32 = make_simplenet_forward(params, compute_dtype=jnp.float32)

    x = jax.random.normal(k_x, (8, input_size), jnp.float32)
    out = jax.block_until_ready(fwd_f32(x))
    ref = reference_forward(x, params)
    assert out.shape == (8, num_classes)
    assert jnp.allclose(out, ref, atol=1e-4, rtol=1e-4), "f32 mismatch vs reference"

    # Larger batch: exercises balanced tiling + the 2-step "parallel" grid path.
    x2 = jax.random.normal(k_x2, (300, input_size), jnp.float32)
    out2 = jax.block_until_ready(fwd_f32(x2))
    ref2 = reference_forward(x2, params)
    assert out2.shape == (300, num_classes)
    assert jnp.allclose(out2, ref2, atol=1e-4, rtol=1e-4), "multi-tile mismatch"

    # bf16 weights/activations with f32 MXU accumulation (loose-tolerance sanity).
    fwd_bf16 = make_simplenet_forward(params, compute_dtype=jnp.bfloat16)
    out_bf = jax.block_until_ready(fwd_bf16(x))
    assert out_bf.shape == (8, num_classes)
    assert jnp.allclose(out_bf.astype(jnp.float32), ref, atol=0.1, rtol=0.1), \
        "bf16 path diverged from reference"

    print("KERNEL_OK")
</pallas_src>

<mosaic_0001>
module attributes {stable_mosaic.version = 11 : i64} {
  func.func @simplenet_kernel(%arg0: i32, %arg1: memref<8x128xf32, #tpu.memory_space<vmem>>, %arg2: memref<128x128xf32, #tpu.memory_space<vmem>>, %arg3: memref<1x128xf32, #tpu.memory_space<vmem>>, %arg4: memref<128x128xf32, #tpu.memory_space<vmem>>, %arg5: memref<1x128xf32, #tpu.memory_space<vmem>>, %arg6: memref<128x128xf32, #tpu.memory_space<vmem>>, %arg7: memref<1x128xf32, #tpu.memory_space<vmem>>, %arg8: memref<8x128xf32, #tpu.memory_space<vmem>>) attributes {dimension_semantics = [#tpu.dimension_semantics<parallel>], iteration_bounds = array<i64: 1>, scalar_prefetch = 0 : i64, scratch_operands = 0 : i64, tpu.core_type = #tpu.core_type<tc>, window_params = [{transform_indices = @transform_0, window_bounds = array<i64: 8, 128>}, {pipeline_mode = #tpu.pipeline_mode<synchronous>, transform_indices = @transform_1, window_bounds = array<i64: 128, 128>}, {pipeline_mode = #tpu.pipeline_mode<synchronous>, transform_indices = @transform_2, window_bounds = array<i64: 1, 128>}, {pipeline_mode = #tpu.pipeline_mode<synchronous>, transform_indices = @transform_3, window_bounds = array<i64: 128, 128>}, {pipeline_mode = #tpu.pipeline_mode<synchronous>, transform_indices = @transform_4, window_bounds = array<i64: 1, 128>}, {pipeline_mode = #tpu.pipeline_mode<synchronous>, transform_indices = @transform_5, window_bounds = array<i64: 128, 128>}, {pipeline_mode = #tpu.pipeline_mode<synchronous>, transform_indices = @transform_6, window_bounds = array<i64: 1, 128>}, {transform_indices = @transform_7, window_bounds = array<i64: 8, 128>}]} {
    %c0 = arith.constant 0 : index
    %c0_0 = arith.constant 0 : index
    %0 = vector.load %arg1[%c0, %c0_0] : memref<8x128xf32, #tpu.memory_space<vmem>>, vector<8x128xf32>
    %c0_1 = arith.constant 0 : index
    %c0_2 = arith.constant 0 : index
    %1 = vector.load %arg2[%c0_1, %c0_2] : memref<128x128xf32, #tpu.memory_space<vmem>>, vector<128x128xf32>
    %cst = arith.constant dense<0.000000e+00> : vector<8x128xf32>
    %2 = tpu.matmul %0, %1, %cst {dimension_numbers = #tpu.dot_dimension_numbers<[1], [0], [0], [1], [0, 0, 1, 1], [], []>} : vector<8x128xf32>, vector<128x128xf32>, vector<8x128xf32> -> vector<8x128xf32>
    %c0_3 = arith.constant 0 : index
    %c0_4 = arith.constant 0 : index
    %3 = vector.load %arg3[%c0_3, %c0_4] : memref<1x128xf32, #tpu.memory_space<vmem>>, vector<1x128xf32>
    %4 = vector.broadcast %3 : vector<1x128xf32> to vector<8x128xf32>
    %5 = arith.addf %2, %4 : vector<8x128xf32>
    %cst_5 = arith.constant 0.000000e+00 : f32
    %6 = vector.broadcast %cst_5 : f32 to vector<8x128xf32>
    %7 = arith.maximumf %5, %6 : vector<8x128xf32>
    %c0_6 = arith.constant 0 : index
    %c0_7 = arith.constant 0 : index
    %8 = vector.load %arg4[%c0_6, %c0_7] : memref<128x128xf32, #tpu.memory_space<vmem>>, vector<128x128xf32>
    %cst_8 = arith.constant dense<0.000000e+00> : vector<8x128xf32>
    %9 = tpu.matmul %7, %8, %cst_8 {dimension_numbers = #tpu.dot_dimension_numbers<[1], [0], [0], [1], [0, 0, 1, 1], [], []>} : vector<8x128xf32>, vector<128x128xf32>, vector<8x128xf32> -> vector<8x128xf32>
    %c0_9 = arith.constant 0 : index
    %c0_10 = arith.constant 0 : index
    %10 = vector.load %arg5[%c0_9, %c0_10] : memref<1x128xf32, #tpu.memory_space<vmem>>, vector<1x128xf32>
    %11 = vector.broadcast %10 : vector<1x128xf32> to vector<8x128xf32>
    %12 = arith.addf %9, %11 : vector<8x128xf32>
    %cst_11 = arith.constant 0.000000e+00 : f32
    %13 = vector.broadcast %cst_11 : f32 to vector<8x128xf32>
    %14 = arith.maximumf %12, %13 : vector<8x128xf32>
    %c0_12 = arith.constant 0 : index
    %c0_13 = arith.constant 0 : index
    %15 = vector.load %arg6[%c0_12, %c0_13] : memref<128x128xf32, #tpu.memory_space<vmem>>, vector<128x128xf32>
    %cst_14 = arith.constant dense<0.000000e+00> : vector<8x128xf32>
    %16 = tpu.matmul %14, %15, %cst_14 {dimension_numbers = #tpu.dot_dimension_numbers<[1], [0], [0], [1], [0, 0, 1, 1], [], []>} : vector<8x128xf32>, vector<128x128xf32>, vector<8x128xf32> -> vector<8x128xf32>
    %c0_15 = arith.constant 0 : index
    %c0_16 = arith.constant 0 : index
    %17 = vector.load %arg7[%c0_15, %c0_16] : memref<1x128xf32, #tpu.memory_space<vmem>>, vector<1x128xf32>
    %18 = vector.broadcast %17 : vector<1x128xf32> to vector<8x128xf32>
    %19 = arith.addf %16, %18 : vector<8x128xf32>
    %c0_17 = arith.constant 0 : index
    %c0_18 = arith.constant 0 : index
    %20 = vector.load %arg8[%c0_17, %c0_18] : memref<8x128xf32, #tpu.memory_space<vmem>>, vector<8x128xf32>
    tpu.vector_store %arg8[%c0_17, %c0_18], %19 {strides = array<i32>} : memref<8x128xf32, #tpu.memory_space<vmem>>, vector<8x128xf32>,
    return
  }
  func.func @transform_0(%arg0: i32) -> (i32, i32) {
    %c0_i32 = arith.constant 0 : i32
    %c0_i32_0 = arith.constant 0 : i32
    return %arg0, %c0_i32 : i32, i32
  }
  func.func @transform_1(%arg0: i32) -> (i32, i32) {
    %c0_i32 = arith.constant 0 : i32
    %c0_i32_0 = arith.constant 0 : i32
    %c0_i32_1 = arith.constant 0 : i32
    return %c0_i32, %c0_i32_0 : i32, i32
  }
  func.func @transform_2(%arg0: i32) -> (i32, i32) {
    %c0_i32 = arith.constant 0 : i32
    %c0_i32_0 = arith.constant 0 : i32
    %c0_i32_1 = arith.constant 0 : i32
    return %c0_i32, %c0_i32_0 : i32, i32
  }
  func.func @transform_3(%arg0: i32) -> (i32, i32) {
    %c0_i32 = arith.constant 0 : i32
    %c0_i32_0 = arith.constant 0 : i32
    %c0_i32_1 = arith.constant 0 : i32
    return %c0_i32, %c0_i32_0 : i32, i32
  }
  func.func @transform_4(%arg0: i32) -> (i32, i32) {
    %c0_i32 = arith.constant 0 : i32
    %c0_i32_0 = arith.constant 0 : i32
    %c0_i32_1 = arith.constant 0 : i32
    return %c0_i32, %c0_i32_0 : i32, i32
  }
  func.func @transform_5(%arg0: i32) -> (i32, i32) {
    %c0_i32 = arith.constant 0 : i32
    %c0_i32_0 = arith.constant 0 : i32
    %c0_i32_1 = arith.constant 0 : i32
    return %c0_i32, %c0_i32_0 : i32, i32
  }
  func.func @transform_6(%arg0: i32) -> (i32, i32) {
    %c0_i32 = arith.constant 0 : i32
    %c0_i32_0 = arith.constant 0 : i32
    %c0_i32_1 = arith.constant 0 : i32
    return %c0_i32, %c0_i32_0 : i32, i32
  }
  func.func @transform_7(%arg0: i32) -> (i32, i32) {
    %c0_i32 = arith.constant 0 : i32
    %c0_i32_0 = arith.constant 0 : i32
    return %arg0, %c0_i32 : i32, i32
  }
}

</mosaic_0001>

<llo_original>
// kernel: forward.1
$region0: #{forward.1}
  #allocation0 [shape = 'u32[]', space=smem, size = 0x4, offset = 0x4, fixed_abs, tag = 'smem constant byte address 0x4 - core index']
  #allocation1 [shape = 'u32[144,128]{1,0:T(1,128)}', space=vmem, size = 0x12000, scoped, tag = 'internal scratch']
  %s0 = inlined_call_operand.vmem [shape: f32[8,128], index: 0, kind: input, shape index: {}]
  %s1 = inlined_call_operand.hbm [shape: f32[128,128], index: 1, kind: input, shape index: {}]
  %s2 = inlined_call_operand.vmem [shape: f32[1,128], index: 2, kind: input, shape index: {}]
  %s3 = inlined_call_operand.hbm [shape: f32[128,128], index: 3, kind: input, shape index: {}]
  %s4 = inlined_call_operand.vmem [shape: f32[1,128], index: 4, kind: input, shape index: {}]
  %s5 = inlined_call_operand.hbm [shape: f32[128,128], index: 5, kind: input, shape index: {}]
  %s6 = inlined_call_operand.vmem [shape: f32[1,128], index: 6, kind: input, shape index: {}]
  %s7 = inlined_call_operand.vmem [shape: f32[8,128], index: 7, kind: output, shape index: {}]
  %s8 = sld [smem:[#allocation0]]
  $region50: #{forward.1} parent=0
    _
  %s10 = ssub.s32 1, %s8
  %s11 = scalar_select 0, %s10, %s8
  $region1: #{forward.1} parent=0
    #allocation2 [shape = 'u8[65536]{0}', space=vmem, size = 0x10000, scoped, tag = 'input window, operand 1, single buffered']
    #allocation3 [shape = 's32[1]{0}', space=sflag, size = 0x4, scoped, tag = 'scoped memory for forward.1']
    #allocation4 [shape = 'u8[65536]{0}', space=vmem, size = 0x10000, scoped, tag = 'input window, operand 3, single buffered']
    #allocation5 [shape = 's32[1]{0}', space=sflag, size = 0x4, scoped, tag = 'scoped memory for forward.1']
    #allocation6 [shape = 'u8[65536]{0}', space=vmem, size = 0x10000, scoped, tag = 'input window, operand 5, single buffered']
    %12 = vsyncpa [#allocation3], 0
    %13 = vsyncpa [#allocation5], 0
    // Predicated region
    $region2: #{forward.1} parent=1 // pred_check
      _
    $region3: #{forward.1} parent=1 // pred_check_branch
      %15 = sbr.rel (0) target = $region5
    $region4: #{forward.1} parent=1 // pred_region
      _
    $region5: #{forward.1} parent=1 // pred_fallthru
      _
    // Predicated region
    $region6: #{forward.1} parent=1 // pred_check
      _
    $region7: #{forward.1} parent=1 // pred_check_branch
      %17 = sbr.rel (0) target = $region9
    $region8: #{forward.1} parent=1 // pred_region
      %s19 = ssub.s32 2048, 2048
      %20 = vsyncadd [#allocation3], %s19
      %s21 = sshll.u32 [#allocation2], 4
      %s22 = int_to_ptr.vmem [resolvable:$true] %s21
      %27 = dma.hbm_to_vmem [thread:$0]  %s1, 2048, %s22, [#allocation3], 128, 128, 8
    $region9: #{forward.1} parent=1 // pred_fallthru
      _
    // Predicated region
    $region10: #{forward.1} parent=1 // pred_check
      _
    $region11: #{forward.1} parent=1 // pred_check_branch
      %29 = sbr.rel (0) target = $region13
    $region12: #{forward.1} parent=1 // pred_region
      _
    $region13: #{forward.1} parent=1 // pred_fallthru
      _
    // Predicated region
    $region14: #{forward.1} parent=1 // pred_check
      _
    $region15: #{forward.1} parent=1 // pred_check_branch
      %31 = sbr.rel (0) target = $region17
    $region16: #{forward.1} parent=1 // pred_region
      %s33 = ssub.s32 2048, 2048
      %34 = vsyncadd [#allocation5], %s33
      %s35 = sshll.u32 [#allocation4], 4
      %s36 = int_to_ptr.vmem [resolvable:$true] %s35
      %41 = dma.hbm_to_vmem [thread:$0]  %s3, 2048, %s36, [#allocation5], 128, 128, 8
    $region17: #{forward.1} parent=1 // pred_fallthru
      _
    // Predicated region
    $region18: #{forward.1} parent=1 // pred_check
      _
    $region19: #{forward.1} parent=1 // pred_check_branch
      %43 = sbr.rel (0) target = $region21
    $region20: #{forward.1} parent=1 // pred_region
      _
    $region21: #{forward.1} parent=1 // pred_fallthru
      _
    // Predicated region
    $region22: #{forward.1} parent=1 // pred_check
      _
    $region23: #{forward.1} parent=1 // pred_check_branch
      %45 = sbr.rel (0) target = $region25
    $region24: #{forward.1} parent=1 // pred_region
      %s47 = ssub.s32 2048, 2048
      %48 = vsyncadd [#allocation5], %s47
      %s49 = sshll.u32 [#allocation6], 4
      %s50 = int_to_ptr.vmem [resolvable:$true] %s49
      %55 = dma.hbm_to_vmem [thread:$0]  %s5, 2048, %s50, [#allocation5], 128, 128, 8
    $region25: #{forward.1} parent=1 // pred_fallthru
      _
    // Predicated region
    $region26: #{forward.1} parent=1 // pred_check
      _
    $region27: #{forward.1} parent=1 // pred_check_branch
      %57 = sbr.rel (0) target = $region29
    $region28: #{forward.1} parent=1 // pred_region
      _
    $region29: #{forward.1} parent=1 // pred_fallthru
      _
    // Predicated region
    $region30: #{forward.1} parent=1 // pred_check
      _
    $region31: #{forward.1} parent=1 // pred_check_branch
      %59 = sbr.rel (0) target = $region33
    $region32: #{forward.1} parent=1 // pred_region
      %60 = dma.done [#allocation3], 2048
    $region33: #{forward.1} parent=1 // pred_fallthru
      _
    // Predicated region
    $region34: #{forward.1} parent=1 // pred_check
      _
    $region35: #{forward.1} parent=1 // pred_check_branch
      %62 = sbr.rel (0) target = $region37
    $region36: #{forward.1} parent=1 // pred_region
      %63 = dma.done [#allocation5], 2048
    $region37: #{forward.1} parent=1 // pred_fallthru
      _
    // Predicated region
    $region38: #{forward.1} parent=1 // pred_check
      _
    $region39: #{forward.1} parent=1 // pred_check_branch
      %65 = sbr.rel (0) target = $region41
    $region40: #{forward.1} parent=1 // pred_region
      %66 = dma.done [#allocation5], 2048
    $region41: #{forward.1} parent=1 // pred_fallthru
      _
    %v67 = vld [vmem:[%s0] sm:$0xff]
    %v68 = vld [vmem:[#allocation2] sm:$0xff]
    %v69 = vld [vmem:[#allocation2 + $0x8] sm:$0xff]
    %v70 = vld [vmem:[#allocation2 + $0x10] sm:$0xff]
    %v71 = vld [vmem:[#allocation2 + $0x18] sm:$0xff]
    %v72 = vld [vmem:[#allocation2 + $0x20] sm:$0xff]
    %v73 = vld [vmem:[#allocation2 + $0x28] sm:$0xff]
    %v74 = vld [vmem:[#allocation2 + $0x30] sm:$0xff]
    %v75 = vld [vmem:[#allocation2 + $0x38] sm:$0xff]
    %v76 = vld [vmem:[#allocation2 + $0x40] sm:$0xff]
    %v77 = vld [vmem:[#allocation2 + $0x48] sm:$0xff]
    %v78 = vld [vmem:[#allocation2 + $0x50] sm:$0xff]
    %v79 = vld [vmem:[#allocation2 + $0x58] sm:$0xff]
    %v80 = vld [vmem:[#allocation2 + $0x60] sm:$0xff]
    %v81 = vld [vmem:[#allocation2 + $0x68] sm:$0xff]
    %v82 = vld [vmem:[#allocation2 + $0x70] sm:$0xff]
    %v83 = vld [vmem:[#allocation2 + $0x78] sm:$0xff]
    %v84 = vld [vmem:[%s2] sm:$0x1]
    %v86 = vlaneseq
    %v87 = vshrl.u32 %v86, 7
    %v88 = vsub.s32 0, %v87
    %v89 = vrot.slane %v84, %v88
    %91 = vmatprep.subr.mxu0 0.0
    %92 = vmatpush1.msra.mxu0 %v83
    %93 = vmatprep.subr.mxu0 0.0
    %94 = vmatpush1.msra.mxu0 %v82
    %95 = vmatprep.subr.mxu0 0.0
    %96 = vmatpush1.msra.mxu0 %v81
    %97 = vmatprep.subr.mxu0 0.0
    %98 = vmatpush1.msra.mxu0 %v80
    %99 = vmatprep.subr.mxu0 0.0
    %100 = vmatpush1.msra.mxu0 %v79
    %101 = vmatprep.subr.mxu0 0.0
    %102 = vmatpush1.msra.mxu0 %v78
    %103 = vmatprep.subr.mxu0 0.0
    %104 = vmatpush1.msra.mxu0 %v77
    %105 = vmatprep.subr.mxu0 0.0
    %106 = vmatpush1.msra.mxu0 %v76
    %107 = vmatprep.subr.mxu0 0.0
    %108 = vmatpush1.msra.mxu0 %v75
    %109 = vmatprep.subr.mxu0 0.0
    %110 = vmatpush1.msra.mxu0 %v74
    %111 = vmatprep.subr.mxu0 0.0
    %112 = vmatpush1.msra.mxu0 %v73
    %113 = vmatprep.subr.mxu0 0.0
    %114 = vmatpush1.msra.mxu0 %v72
    %115 = vmatprep.subr.mxu0 0.0
    %116 = vmatpush1.msra.mxu0 %v71
    %117 = vmatprep.subr.mxu0 0.0
    %118 = vmatpush1.msra.mxu0 %v70
    %119 = vmatprep.subr.mxu0 0.0
    %120 = vmatpush1.msra.mxu0 %v69
    %121 = vmatprep.subr.mxu0 0.0
    %122 = vmatpush1.msra.mxu0 %v68
    %123 = vmatprep.subr.mxu0 0.0
    %124 = vmatpush2.msra.mxu0 0.0
    %125 = vmatprep.subr.mxu0 0.0
    %126 = vmatpush2.msra.mxu0 0.0
    %127 = vmatprep.subr.mxu0 0.0
    %128 = vmatpush2.msra.mxu0 0.0
    %129 = vmatprep.subr.mxu0 0.0
    %130 = vmatpush2.msra.mxu0 0.0
    %131 = vmatprep.subr.mxu0 0.0
    %132 = vmatpush2.msra.mxu0 0.0
    %133 = vmatprep.subr.mxu0 0.0
    %134 = vmatpush2.msra.mxu0 0.0
    %135 = vmatprep.subr.mxu0 0.0
    %136 = vmatpush2.msra.mxu0 0.0
    %137 = vmatprep.subr.mxu0 0.0
    %138 = vmatpush2.msra.mxu0 0.0
    %139 = vmatprep.subr.mxu0 0.0
    %140 = vmatpush2.msra.mxu0 0.0
    %141 = vmatprep.subr.mxu0 0.0
    %142 = vmatpush2.msra.mxu0 0.0
    %143 = vmatprep.subr.mxu0 0.0
    %144 = vmatpush2.msra.mxu0 0.0
    %145 = vmatprep.subr.mxu0 0.0
    %146 = vmatpush2.msra.mxu0 0.0
    %147 = vmatprep.subr.mxu0 0.0
    %148 = vmatpush2.msra.mxu0 0.0
    %149 = vmatprep.subr.mxu0 0.0
    %150 = vmatpush2.msra.mxu0 0.0
    %151 = vmatprep.subr.mxu0 0.0
    %152 = vmatpush2.msra.mxu0 0.0
    %153 = vmatprep.subr.mxu0 0.0
    %154 = vmatpush2.msra.mxu0 0.0
    %155 = vmatprep.mubr.f32.mxu0 0.0
    %156 = vmatmul.mubr.f32.gmra.mxu0 %v67
    %v157 = vpop.f32.mrf.mxu0
    %v158 = vadd.f32 %v89, %v157
    %v159 = vpop.f32.mrf.mxu0
    %160 = vdwg.mxu0
    %v161 = vmax.f32 %v158, 0.0
    %v162 = vld [vmem:[#allocation4] sm:$0xff]
    %v163 = vld [vmem:[#allocation4 + $0x8] sm:$0xff]
    %v164 = vld [vmem:[#allocation4 + $0x10] sm:$0xff]
    %v165 = vld [vmem:[#allocation4 + $0x18] sm:$0xff]
    %v166 = vld [vmem:[#allocation4 + $0x20] sm:$0xff]
    %v167 = vld [vmem:[#allocation4 + $0x28] sm:$0xff]
    %v168 = vld [vmem:[#allocation4 + $0x30] sm:$0xff]
    %v169 = vld [vmem:[#allocation4 + $0x38] sm:$0xff]
    %v170 = vld [vmem:[#allocation4 + $0x40] sm:$0xff]
    %v171 = vld [vmem:[#allocation4 + $0x48] sm:$0xff]
    %v172 = vld [vmem:[#allocation4 + $0x50] sm:$0xff]
    %v173 = vld [vmem:[#allocation4 + $0x58] sm:$0xff]
    %v174 = vld [vmem:[#allocation4 + $0x60] sm:$0xff]
    %v175 = vld [vmem:[#allocation4 + $0x68] sm:$0xff]
    %v176 = vld [vmem:[#allocation4 + $0x70] sm:$0xff]
    %v177 = vld [vmem:[#allocation4 + $0x78] sm:$0xff]
    %v178 = vld [vmem:[%s4] sm:$0x1]
    %v180 = vlaneseq
    %v181 = vshrl.u32 %v180, 7
    %v182 = vsub.s32 0, %v181
    %v183 = vrot.slane %v178, %v182
    %185 = vmatprep.subr.mxu0 0.0
    %186 = vmatpush1.msra.mxu0 %v177
    %187 = vmatprep.subr.mxu0 0.0
    %188 = vmatpush1.msra.mxu0 %v176
    %189 = vmatprep.subr.mxu0 0.0
    %190 = vmatpush1.msra.mxu0 %v175
    %191 = vmatprep.subr.mxu0 0.0
    %192 = vmatpush1.msra.mxu0 %v174
    %193 = vmatprep.subr.mxu0 0.0
    %194 = vmatpush1.msra.mxu0 %v173
    %195 = vmatprep.subr.mxu0 0.0
    %196 = vmatpush1.msra.mxu0 %v172
    %197 = vmatprep.subr.mxu0 0.0
    %198 = vmatpush1.msra.mxu0 %v171
    %199 = vmatprep.subr.mxu0 0.0
    %200 = vmatpush1.msra.mxu0 %v170
    %201 = vmatprep.subr.mxu0 0.0
    %202 = vmatpush1.msra.mxu0 %v169
    %203 = vmatprep.subr.mxu0 0.0
    %204 = vmatpush1.msra.mxu0 %v168
    %205 = vmatprep.subr.mxu0 0.0
    %206 = vmatpush1.msra.mxu0 %v167
    %207 = vmatprep.subr.mxu0 0.0
    %208 = vmatpush1.msra.mxu0 %v166
    %209 = vmatprep.subr.mxu0 0.0
    %210 = vmatpush1.msra.mxu0 %v165
    %211 = vmatprep.subr.mxu0 0.0
    %212 = vmatpush1.msra.mxu0 %v164
    %213 = vmatprep.subr.mxu0 0.0
    %214 = vmatpush1.msra.mxu0 %v163
    %215 = vmatprep.subr.mxu0 0.0
    %216 = vmatpush1.msra.mxu0 %v162
    %217 = vmatprep.subr.mxu0 0.0
    %218 = vmatpush2.msra.mxu0 0.0
    %219 = vmatprep.subr.mxu0 0.0
    %220 = vmatpush2.msra.mxu0 0.0
    %221 = vmatprep.subr.mxu0 0.0
    %222 = vmatpush2.msra.mxu0 0.0
    %223 = vmatprep.subr.mxu0 0.0
    %224 = vmatpush2.msra.mxu0 0.0
    %225 = vmatprep.subr.mxu0 0.0
    %226 = vmatpush2.msra.mxu0 0.0
    %227 = vmatprep.subr.mxu0 0.0
    %228 = vmatpush2.msra.mxu0 0.0
    %229 = vmatprep.subr.mxu0 0.0
    %230 = vmatpush2.msra.mxu0 0.0
    %231 = vmatprep.subr.mxu0 0.0
    %232 = vmatpush2.msra.mxu0 0.0
    %233 = vmatprep.subr.mxu0 0.0
    %234 = vmatpush2.msra.mxu0 0.0
    %235 = vmatprep.subr.mxu0 0.0
    %236 = vmatpush2.msra.mxu0 0.0
    %237 = vmatprep.subr.mxu0 0.0
    %238 = vmatpush2.msra.mxu0 0.0
    %239 = vmatprep.subr.mxu0 0.0
    %240 = vmatpush2.msra.mxu0 0.0
    %241 = vmatprep.subr.mxu0 0.0
    %242 = vmatpush2.msra.mxu0 0.0
    %243 = vmatprep.subr.mxu0 0.0
    %244 = vmatpush2.msra.mxu0 0.0
    %245 = vmatprep.subr.mxu0 0.0
    %246 = vmatpush2.msra.mxu0 0.0
    %247 = vmatprep.subr.mxu0 0.0
    %248 = vmatpush2.msra.mxu0 0.0
    %249 = vmatprep.mubr.f32.mxu0 0.0
    %250 = vmatmul.mubr.f32.gmra.mxu0 %v161
    %v251 = vpop.f32.mrf.mxu0
    %v252 = vadd.f32 %v183, %v251
    %v253 = vpop.f32.mrf.mxu0
    %254 = vdwg.mxu0
    %v255 = vmax.f32 %v252, 0.0
    %v256 = vld [vmem:[#allocation6] sm:$0xff]
    %v257 = vld [vmem:[#allocation6 + $0x8] sm:$0xff]
    %v258 = vld [vmem:[#allocation6 + $0x10] sm:$0xff]
    %v259 = vld [vmem:[#allocation6 + $0x18] sm:$0xff]
    %v260 = vld [vmem:[#allocation6 + $0x20] sm:$0xff]
    %v261 = vld [vmem:[#allocation6 + $0x28] sm:$0xff]
    %v262 = vld [vmem:[#allocation6 + $0x30] sm:$0xff]
    %v263 = vld [vmem:[#allocation6 + $0x38] sm:$0xff]
    %v264 = vld [vmem:[#allocation6 + $0x40] sm:$0xff]
    %v265 = vld [vmem:[#allocation6 + $0x48] sm:$0xff]
    %v266 = vld [vmem:[#allocation6 + $0x50] sm:$0xff]
    %v267 = vld [vmem:[#allocation6 + $0x58] sm:$0xff]
    %v268 = vld [vmem:[#allocation6 + $0x60] sm:$0xff]
    %v269 = vld [vmem:[#allocation6 + $0x68] sm:$0xff]
    %v270 = vld [vmem:[#allocation6 + $0x70] sm:$0xff]
    %v271 = vld [vmem:[#allocation6 + $0x78] sm:$0xff]
    %v272 = vld [vmem:[%s6] sm:$0x1]
    %v274 = vlaneseq
    %v275 = vshrl.u32 %v274, 7
    %v276 = vsub.s32 0, %v275
    %v277 = vrot.slane %v272, %v276
    %279 = vmatprep.subr.mxu0 0.0
    %280 = vmatpush1.msra.mxu0 %v271
    %281 = vmatprep.subr.mxu0 0.0
    %282 = vmatpush1.msra.mxu0 %v270
    %283 = vmatprep.subr.mxu0 0.0
    %284 = vmatpush1.msra.mxu0 %v269
    %285 = vmatprep.subr.mxu0 0.0
    %286 = vmatpush1.msra.mxu0 %v268
    %287 = vmatprep.subr.mxu0 0.0
    %288 = vmatpush1.msra.mxu0 %v267
    %289 = vmatprep.subr.mxu0 0.0
    %290 = vmatpush1.msra.mxu0 %v266
    %291 = vmatprep.subr.mxu0 0.0
    %292 = vmatpush1.msra.mxu0 %v265
    %293 = vmatprep.subr.mxu0 0.0
    %294 = vmatpush1.msra.mxu0 %v264
    %295 = vmatprep.subr.mxu0 0.0
    %296 = vmatpush1.msra.mxu0 %v263
    %297 = vmatprep.subr.mxu0 0.0
    %298 = vmatpush1.msra.mxu0 %v262
    %299 = vmatprep.subr.mxu0 0.0
    %300 = vmatpush1.msra.mxu0 %v261
    %301 = vmatprep.subr.mxu0 0.0
    %302 = vmatpush1.msra.mxu0 %v260
    %303 = vmatprep.subr.mxu0 0.0
    %304 = vmatpush1.msra.mxu0 %v259
    %305 = vmatprep.subr.mxu0 0.0
    %306 = vmatpush1.msra.mxu0 %v258
    %307 = vmatprep.subr.mxu0 0.0
    %308 = vmatpush1.msra.mxu0 %v257
    %309 = vmatprep.subr.mxu0 0.0
    %310 = vmatpush1.msra.mxu0 %v256
    %311 = vmatprep.subr.mxu0 0.0
    %312 = vmatpush2.msra.mxu0 0.0
    %313 = vmatprep.subr.mxu0 0.0
    %314 = vmatpush2.msra.mxu0 0.0
    %315 = vmatprep.subr.mxu0 0.0
    %316 = vmatpush2.msra.mxu0 0.0
    %317 = vmatprep.subr.mxu0 0.0
    %318 = vmatpush2.msra.mxu0 0.0
    %319 = vmatprep.subr.mxu0 0.0
    %320 = vmatpush2.msra.mxu0 0.0
    %321 = vmatprep.subr.mxu0 0.0
    %322 = vmatpush2.msra.mxu0 0.0
    %323 = vmatprep.subr.mxu0 0.0
    %324 = vmatpush2.msra.mxu0 0.0
    %325 = vmatprep.subr.mxu0 0.0
    %326 = vmatpush2.msra.mxu0 0.0
    %327 = vmatprep.subr.mxu0 0.0
    %328 = vmatpush2.msra.mxu0 0.0
    %329 = vmatprep.subr.mxu0 0.0
    %330 = vmatpush2.msra.mxu0 0.0
    %331 = vmatprep.subr.mxu0 0.0
    %332 = vmatpush2.msra.mxu0 0.0
    %333 = vmatprep.subr.mxu0 0.0
    %334 = vmatpush2.msra.mxu0 0.0
    %335 = vmatprep.subr.mxu0 0.0
    %336 = vmatpush2.msra.mxu0 0.0
    %337 = vmatprep.subr.mxu0 0.0
    %338 = vmatpush2.msra.mxu0 0.0
    %339 = vmatprep.subr.mxu0 0.0
    %340 = vmatpush2.msra.mxu0 0.0
    %341 = vmatprep.subr.mxu0 0.0
    %342 = vmatpush2.msra.mxu0 0.0
    %343 = vmatprep.mubr.f32.mxu0 0.0
    %344 = vmatmul.mubr.f32.gmra.mxu0 %v255
    %v345 = vpop.f32.mrf.mxu0
    %v346 = vadd.f32 %v277, %v345
    %v347 = vpop.f32.mrf.mxu0
    %348 = vdwg.mxu0
    %349 = vst [vmem:[%s7] sm:$0xff] %v346
    // Predicated region
    $region42: #{forward.1} parent=1 // pred_check
      _
    $region43: #{forward.1} parent=1 // pred_check_branch
      %351 = sbr.rel (0) target = $region45
    $region44: #{forward.1} parent=1 // pred_region
      _
    $region45: #{forward.1} parent=1 // pred_fallthru
      _
    // Predicated region
    $region46: #{forward.1} parent=1 // pred_check
      _
    $region47: #{forward.1} parent=1 // pred_check_branch
      %353 = sbr.rel (0) target = $region49
    $region48: #{forward.1} parent=1 // pred_region
      _
    $region49: #{forward.1} parent=1 // pred_fallthru
      _
    %354 = vsyncpa [#allocation3], 1
    %355 = vsyncpa [#allocation5], 1

</llo_original>
